<compile_context>
chip_gen: v7x
topology: tpu7x:2x2x1
jax: 0.10.0
libtpu: 0.0.40
codegen_flags: <defaults>
</compile_context>

<pallas_src>
import jax
import jax.numpy as jnp
from jax import lax
from jax.experimental import pallas as pl
from jax.experimental.pallas import tpu as pltpu

DROPOUT_P = 0.1


# ----------------------------- Pallas kernel --------------------------------

def _layernorm_fm(h, gamma, beta, eps=1e-5):
    """LayerNorm over the feature axis (axis 0 in feature-major layout)."""
    mu = jnp.mean(h, axis=0, keepdims=True)
    xc = h - mu
    var = jnp.mean(xc * xc, axis=0, keepdims=True)
    return xc * lax.rsqrt(var + eps) * gamma + beta


def gnn_kernel(a_ref, x_ref, w_ref, v_ref, m_ref, out_ref):
    """Fused 3-layer GCN forward in feature-major layout.

    a_ref  : (N, N)      bf16  A_hat^T (normalized adjacency, transposed)
    x_ref  : (H, N)      f32   feature-major input; rows F_IN..H zero-padded
    w_ref  : (2H+C, H)   f32   [W1^T (zero-padded cols); W2^T; W3^T]
    v_ref  : (H, 7)      f32   columns: b1, g1, beta1, b2, g2, beta2, b3(pad)
    m_ref  : (3H, N)     f32   inverted-dropout scale masks for the 3 layers
    out_ref: (C, N)      f32   feature-major logits
    """
    hidden = x_ref.shape[0]
    n_cls = out_ref.shape[0]

    a = a_ref[...]                                   # (N, N) bf16, loaded once
    h = x_ref[...]                                   # (H, N) f32

    w1t = w_ref[0:hidden, :]                         # (H, H), cols >= F_IN zero
    w2t = w_ref[hidden:2 * hidden, :]                # (H, H)
    w3t = w_ref[2 * hidden:2 * hidden + n_cls, :]    # (C, H)

    b1, g1, be1 = v_ref[:, 0:1], v_ref[:, 1:2], v_ref[:, 2:3]
    b2, g2, be2 = v_ref[:, 3:4], v_ref[:, 4:5], v_ref[:, 5:6]
    b3 = v_ref[0:n_cls, 6:7]

    # ---- layer 0: dropout -> GraphConv(F_IN, H) -> LayerNorm -> ReLU ----
    h = h * m_ref[0:hidden, :]
    h = jnp.dot(h.astype(jnp.bfloat16), a, preferred_element_type=jnp.float32)
    h = jnp.dot(w1t, h, preferred_element_type=jnp.float32) + b1
    h = jnp.maximum(_layernorm_fm(h, g1, be1), 0.0)

    # ---- layer 1: dropout -> GraphConv(H, H) -> LayerNorm -> ReLU ----
    h = h * m_ref[hidden:2 * hidden, :]
    h = jnp.dot(h.astype(jnp.bfloat16), a, preferred_element_type=jnp.float32)
    h = jnp.dot(w2t, h, preferred_element_type=jnp.float32) + b2
    h = jnp.maximum(_layernorm_fm(h, g2, be2), 0.0)

    # ---- layer 2: dropout -> Linear(H, C) ----
    h = h * m_ref[2 * hidden:3 * hidden, :]
    out_ref[...] = jnp.dot(w3t, h, preferred_element_type=jnp.float32) + b3


# ------------------------------ JAX wrapper ----------------------------------

@jax.jit
def gnn_forward(dropout_key, a_hat, x,
                w1, b1, g1, be1,
                w2, b2, g2, be2,
                w3, b3):
    n, f_in = x.shape
    hidden = w1.shape[1]
    n_classes = w3.shape[1]
    p = DROPOUT_P

    # --- feature-major, lane-dense repack (nodes on the 128-lane axis) ---
    x_t = jnp.zeros((hidden, n), jnp.float32).at[:f_in, :].set(x.T)
    a_t = a_hat.T.astype(jnp.bfloat16)          # MXU aggregation operand (bf16)

    # pack the three (transposed) weight matrices into one slab: (2H + C, H)
    w1t = jnp.zeros((hidden, hidden), jnp.float32).at[:, :f_in].set(w1.T)
    w_slab = jnp.concatenate([w1t, w2.T, w3.T], axis=0)

    # pack per-feature vectors (biases, LN gamma/beta) as columns: (H, 7)
    b3c = jnp.zeros((hidden,), jnp.float32).at[:n_classes].set(b3.reshape(-1))
    v_slab = jnp.stack([b1.reshape(-1), g1.reshape(-1), be1.reshape(-1),
                        b2.reshape(-1), g2.reshape(-1), be2.reshape(-1),
                        b3c], axis=1)

    # inverted-dropout scale masks (0 or 1/(1-p)), one (H, N) block per layer.
    # F.dropout(h, p) in the reference uses training=True unconditionally, so
    # dropout is always applied; for eval just pass an all-ones mask slab.
    # TODO(synk): expose a training flag if eval-mode (identity dropout) is needed.
    keep = jax.random.bernoulli(dropout_key, 1.0 - p, (3 * hidden, n))
    m_slab = keep.astype(jnp.float32) * (1.0 / (1.0 - p))

    flops = (2 * (2 * hidden * n * n)                       # two aggregations
             + 2 * n * hidden * (2 * hidden + n_classes))   # weight matmuls
    bytes_accessed = (a_t.size * 2
                      + 4 * (x_t.size + w_slab.size + v_slab.size
                             + m_slab.size + n_classes * n))

    vmem = pl.BlockSpec(memory_space=pltpu.MemorySpace.VMEM)
    out_t = pl.pallas_call(
        gnn_kernel,
        out_shape=jax.ShapeDtypeStruct((n_classes, n), jnp.float32),
        in_specs=[vmem, vmem, vmem, vmem, vmem],     # exactly 5 operands below
        out_specs=vmem,
        cost_estimate=pl.CostEstimate(flops=flops,
                                      transcendentals=2 * n,
                                      bytes_accessed=bytes_accessed),
    )(a_t, x_t, w_slab, v_slab, m_slab)

    return out_t.T                                   # back to node-major (N, C)


# ----------------------------- parameter init --------------------------------

def linear_init(key, fan_in, fan_out):
    """PyTorch nn.Linear-style uniform init; weight stored as [in, out]."""
    kw, kb = jax.random.split(key)
    bound = 1.0 / jnp.sqrt(fan_in)
    w = jax.random.uniform(kw, (fan_in, fan_out), jnp.float32, -bound, bound)
    b = jax.random.uniform(kb, (fan_out,), jnp.float32, -bound, bound)
    return w, b


def build_graph(key, n, p_edge=0.05):
    """Deterministic symmetric random graph -> normalized dense adjacency."""
    a = jax.random.bernoulli(key, p_edge, (n, n)).astype(jnp.float32)
    a = jnp.maximum(a, a.T)                         # symmetrize
    a = a * (1.0 - jnp.eye(n, dtype=jnp.float32))   # no self-loops (DGL default)
    deg = jnp.clip(jnp.sum(a, axis=1), 1.0, None)   # clamp(min=1) as in GraphConv
    d_inv_sqrt = 1.0 / jnp.sqrt(deg)
    return a * d_inv_sqrt[:, None] * d_inv_sqrt[None, :]


if __name__ == "__main__":
    N = 128            # number of nodes (one 128-lane tile)
    F_IN = 16          # input_feature_dim
    HIDDEN = 32        # layer_dim
    N_CLASSES = 8      # n_classes

    key = jax.random.PRNGKey(0)
    kg, kx, k1, k2, k3, kd = jax.random.split(key, 6)

    a_hat = build_graph(kg, N)
    x = jax.random.normal(kx, (N, F_IN), jnp.float32)

    w1, b1 = linear_init(k1, F_IN, HIDDEN)          # GraphConv 0 weight/bias
    w2, b2 = linear_init(k2, HIDDEN, HIDDEN)        # GraphConv 1 weight/bias
    w3, b3 = linear_init(k3, HIDDEN, N_CLASSES)     # final nn.Linear

    # LayerNorm affine params at PyTorch init (gamma=1, beta=0)
    g1 = jnp.ones((HIDDEN,), jnp.float32)
    be1 = jnp.zeros((HIDDEN,), jnp.float32)
    g2 = jnp.ones((HIDDEN,), jnp.float32)
    be2 = jnp.zeros((HIDDEN,), jnp.float32)

    out = gnn_forward(kd, a_hat, x,
                      w1, b1, g1, be1,
                      w2, b2, g2, be2,
                      w3, b3)
    jax.block_until_ready(out)

    assert out.shape == (N, N_CLASSES) and out.dtype == jnp.float32
    assert bool(jnp.all(jnp.isfinite(out)))
    print("KERNEL_OK")
</pallas_src>

<mosaic_0001>
module attributes {stable_mosaic.version = 11 : i64} {
  func.func @gnn_kernel(%arg0: memref<128x128xbf16, #tpu.memory_space<vmem>>, %arg1: memref<32x128xf32, #tpu.memory_space<vmem>>, %arg2: memref<72x32xf32, #tpu.memory_space<vmem>>, %arg3: memref<32x7xf32, #tpu.memory_space<vmem>>, %arg4: memref<96x128xf32, #tpu.memory_space<vmem>>, %arg5: memref<8x128xf32, #tpu.memory_space<vmem>>) attributes {dimension_semantics = [], scalar_prefetch = 0 : i64, scratch_operands = 0 : i64, tpu.core_type = #tpu.core_type<tc>} {
    %c0 = arith.constant 0 : index
    %c0_0 = arith.constant 0 : index
    %0 = vector.load %arg0[%c0, %c0_0] : memref<128x128xbf16, #tpu.memory_space<vmem>>, vector<128x128xbf16>
    %c0_1 = arith.constant 0 : index
    %c0_2 = arith.constant 0 : index
    %1 = vector.load %arg1[%c0_1, %c0_2] : memref<32x128xf32, #tpu.memory_space<vmem>>, vector<32x128xf32>
    %c0_3 = arith.constant 0 : index
    %c0_4 = arith.constant 0 : index
    %2 = vector.load %arg2[%c0_3, %c0_4] : memref<72x32xf32, #tpu.memory_space<vmem>>, vector<32x32xf32>
    %c32 = arith.constant 32 : index
    %c0_5 = arith.constant 0 : index
    %3 = vector.load %arg2[%c32, %c0_5] : memref<72x32xf32, #tpu.memory_space<vmem>>, vector<32x32xf32>
    %c64 = arith.constant 64 : index
    %c0_6 = arith.constant 0 : index
    %4 = vector.load %arg2[%c64, %c0_6] : memref<72x32xf32, #tpu.memory_space<vmem>>, vector<8x32xf32>
    %c0_7 = arith.constant 0 : index
    %c0_8 = arith.constant 0 : index
    %5 = vector.load %arg3[%c0_7, %c0_8] : memref<32x7xf32, #tpu.memory_space<vmem>>, vector<32x1xf32>
    %c0_9 = arith.constant 0 : index
    %c1 = arith.constant 1 : index
    %6 = vector.load %arg3[%c0_9, %c1] : memref<32x7xf32, #tpu.memory_space<vmem>>, vector<32x1xf32>
    %c0_10 = arith.constant 0 : index
    %c2 = arith.constant 2 : index
    %7 = vector.load %arg3[%c0_10, %c2] : memref<32x7xf32, #tpu.memory_space<vmem>>, vector<32x1xf32>
    %c0_11 = arith.constant 0 : index
    %c3 = arith.constant 3 : index
    %8 = vector.load %arg3[%c0_11, %c3] : memref<32x7xf32, #tpu.memory_space<vmem>>, vector<32x1xf32>
    %c0_12 = arith.constant 0 : index
    %c4 = arith.constant 4 : index
    %9 = vector.load %arg3[%c0_12, %c4] : memref<32x7xf32, #tpu.memory_space<vmem>>, vector<32x1xf32>
    %c0_13 = arith.constant 0 : index
    %c5 = arith.constant 5 : index
    %10 = vector.load %arg3[%c0_13, %c5] : memref<32x7xf32, #tpu.memory_space<vmem>>, vector<32x1xf32>
    %c0_14 = arith.constant 0 : index
    %c6 = arith.constant 6 : index
    %11 = vector.load %arg3[%c0_14, %c6] : memref<32x7xf32, #tpu.memory_space<vmem>>, vector<8x1xf32>
    %c0_15 = arith.constant 0 : index
    %c0_16 = arith.constant 0 : index
    %12 = vector.load %arg4[%c0_15, %c0_16] : memref<96x128xf32, #tpu.memory_space<vmem>>, vector<32x128xf32>
    %13 = arith.mulf %1, %12 : vector<32x128xf32>
    %14 = arith.truncf %13 : vector<32x128xf32> to vector<32x128xbf16>
    %cst = arith.constant dense<0.000000e+00> : vector<32x128xf32>
    %15 = tpu.matmul %14, %0, %cst {dimension_numbers = #tpu.dot_dimension_numbers<[1], [0], [0], [1], [0, 0, 1, 1], [], []>} : vector<32x128xbf16>, vector<128x128xbf16>, vector<32x128xf32> -> vector<32x128xf32>
    %cst_17 = arith.constant dense<0.000000e+00> : vector<32x128xf32>
    %16 = tpu.matmul %2, %15, %cst_17 {dimension_numbers = #tpu.dot_dimension_numbers<[1], [0], [0], [1], [0, 0, 1, 1], [], []>} : vector<32x32xf32>, vector<32x128xf32>, vector<32x128xf32> -> vector<32x128xf32>
    %17 = vector.broadcast %5 : vector<32x1xf32> to vector<32x128xf32>
    %18 = arith.addf %16, %17 : vector<32x128xf32>
    %cst_18 = arith.constant dense<0.000000e+00> : vector<128xf32>
    %19 = vector.multi_reduction <add>, %18, %cst_18 [0] : vector<32x128xf32> to vector<128xf32>
    %20 = vector.shape_cast %19 : vector<128xf32> to vector<1x128xf32>
    %cst_19 = arith.constant 3.200000e+01 : f32
    %21 = vector.broadcast %cst_19 : f32 to vector<1x128xf32>
    %22 = arith.divf %20, %21 : vector<1x128xf32>
    %23 = vector.broadcast %22 : vector<1x128xf32> to vector<32x128xf32>
    %24 = arith.subf %18, %23 : vector<32x128xf32>
    %25 = arith.mulf %24, %24 : vector<32x128xf32>
    %cst_20 = arith.constant dense<0.000000e+00> : vector<128xf32>
    %26 = vector.multi_reduction <add>, %25, %cst_20 [0] : vector<32x128xf32> to vector<128xf32>
    %27 = vector.shape_cast %26 : vector<128xf32> to vector<1x128xf32>
    %cst_21 = arith.constant 3.200000e+01 : f32
    %28 = vector.broadcast %cst_21 : f32 to vector<1x128xf32>
    %29 = arith.divf %27, %28 : vector<1x128xf32>
    %cst_22 = arith.constant 9.99999974E-6 : f32
    %30 = vector.broadcast %cst_22 : f32 to vector<1x128xf32>
    %31 = arith.addf %29, %30 : vector<1x128xf32>
    %32 = math.rsqrt %31 : vector<1x128xf32>
    %33 = vector.broadcast %32 : vector<1x128xf32> to vector<32x128xf32>
    %34 = arith.mulf %24, %33 : vector<32x128xf32>
    %35 = vector.broadcast %6 : vector<32x1xf32> to vector<32x128xf32>
    %36 = arith.mulf %34, %35 : vector<32x128xf32>
    %37 = vector.broadcast %7 : vector<32x1xf32> to vector<32x128xf32>
    %38 = arith.addf %36, %37 : vector<32x128xf32>
    %cst_23 = arith.constant 0.000000e+00 : f32
    %39 = vector.broadcast %cst_23 : f32 to vector<32x128xf32>
    %40 = arith.maximumf %38, %39 : vector<32x128xf32>
    %c32_24 = arith.constant 32 : index
    %c0_25 = arith.constant 0 : index
    %41 = vector.load %arg4[%c32_24, %c0_25] : memref<96x128xf32, #tpu.memory_space<vmem>>, vector<32x128xf32>
    %42 = arith.mulf %40, %41 : vector<32x128xf32>
    %43 = arith.truncf %42 : vector<32x128xf32> to vector<32x128xbf16>
    %cst_26 = arith.constant dense<0.000000e+00> : vector<32x128xf32>
    %44 = tpu.matmul %43, %0, %cst_26 {dimension_numbers = #tpu.dot_dimension_numbers<[1], [0], [0], [1], [0, 0, 1, 1], [], []>} : vector<32x128xbf16>, vector<128x128xbf16>, vector<32x128xf32> -> vector<32x128xf32>
    %cst_27 = arith.constant dense<0.000000e+00> : vector<32x128xf32>
    %45 = tpu.matmul %3, %44, %cst_27 {dimension_numbers = #tpu.dot_dimension_numbers<[1], [0], [0], [1], [0, 0, 1, 1], [], []>} : vector<32x32xf32>, vector<32x128xf32>, vector<32x128xf32> -> vector<32x128xf32>
    %46 = vector.broadcast %8 : vector<32x1xf32> to vector<32x128xf32>
    %47 = arith.addf %45, %46 : vector<32x128xf32>
    %cst_28 = arith.constant dense<0.000000e+00> : vector<128xf32>
    %48 = vector.multi_reduction <add>, %47, %cst_28 [0] : vector<32x128xf32> to vector<128xf32>
    %49 = vector.shape_cast %48 : vector<128xf32> to vector<1x128xf32>
    %cst_29 = arith.constant 3.200000e+01 : f32
    %50 = vector.broadcast %cst_29 : f32 to vector<1x128xf32>
    %51 = arith.divf %49, %50 : vector<1x128xf32>
    %52 = vector.broadcast %51 : vector<1x128xf32> to vector<32x128xf32>
    %53 = arith.subf %47, %52 : vector<32x128xf32>
    %54 = arith.mulf %53, %53 : vector<32x128xf32>
    %cst_30 = arith.constant dense<0.000000e+00> : vector<128xf32>
    %55 = vector.multi_reduction <add>, %54, %cst_30 [0] : vector<32x128xf32> to vector<128xf32>
    %56 = vector.shape_cast %55 : vector<128xf32> to vector<1x128xf32>
    %cst_31 = arith.constant 3.200000e+01 : f32
    %57 = vector.broadcast %cst_31 : f32 to vector<1x128xf32>
    %58 = arith.divf %56, %57 : vector<1x128xf32>
    %cst_32 = arith.constant 9.99999974E-6 : f32
    %59 = vector.broadcast %cst_32 : f32 to vector<1x128xf32>
    %60 = arith.addf %58, %59 : vector<1x128xf32>
    %61 = math.rsqrt %60 : vector<1x128xf32>
    %62 = vector.broadcast %61 : vector<1x128xf32> to vector<32x128xf32>
    %63 = arith.mulf %53, %62 : vector<32x128xf32>
    %64 = vector.broadcast %9 : vector<32x1xf32> to vector<32x128xf32>
    %65 = arith.mulf %63, %64 : vector<32x128xf32>
    %66 = vector.broadcast %10 : vector<32x1xf32> to vector<32x128xf32>
    %67 = arith.addf %65, %66 : vector<32x128xf32>
    %cst_33 = arith.constant 0.000000e+00 : f32
    %68 = vector.broadcast %cst_33 : f32 to vector<32x128xf32>
    %69 = arith.maximumf %67, %68 : vector<32x128xf32>
    %c64_34 = arith.constant 64 : index
    %c0_35 = arith.constant 0 : index
    %70 = vector.load %arg4[%c64_34, %c0_35] : memref<96x128xf32, #tpu.memory_space<vmem>>, vector<32x128xf32>
    %71 = arith.mulf %69, %70 : vector<32x128xf32>
    %cst_36 = arith.constant dense<0.000000e+00> : vector<8x128xf32>
    %72 = tpu.matmul %4, %71, %cst_36 {dimension_numbers = #tpu.dot_dimension_numbers<[1], [0], [0], [1], [0, 0, 1, 1], [], []>} : vector<8x32xf32>, vector<32x128xf32>, vector<8x128xf32> -> vector<8x128xf32>
    %73 = vector.broadcast %11 : vector<8x1xf32> to vector<8x128xf32>
    %74 = arith.addf %72, %73 : vector<8x128xf32>
    %c0_37 = arith.constant 0 : index
    %c0_38 = arith.constant 0 : index
    %75 = vector.load %arg5[%c0_37, %c0_38] : memref<8x128xf32, #tpu.memory_space<vmem>>, vector<8x128xf32>
    tpu.vector_store %arg5[%c0_37, %c0_38], %74 {strides = array<i32>} : memref<8x128xf32, #tpu.memory_space<vmem>>, vector<8x128xf32>,
    return
  }
}

</mosaic_0001>

<llo_original>
// kernel: gnn_forward.1
$region0: #{gnn_forward.1}
  #allocation0 [shape = 'u32[]', space=smem, size = 0x4, offset = 0x4, fixed_abs, tag = 'smem constant byte address 0x4 - core index']
  #allocation1 [shape = 'u32[144,128]{1,0:T(1,128)}', space=vmem, size = 0x12000, scoped, tag = 'internal scratch']
  %s0 = inlined_call_operand.vmem [shape: bf16[128,128], index: 0, kind: input, shape index: {}]
  %s1 = inlined_call_operand.vmem [shape: f32[32,128], index: 1, kind: input, shape index: {}]
  %s2 = inlined_call_operand.vmem [shape: f32[72,32], index: 2, kind: input, shape index: {}]
  %s3 = inlined_call_operand.vmem [shape: f32[32,7], index: 3, kind: input, shape index: {}]
  %s4 = inlined_call_operand.vmem [shape: f32[96,128], index: 4, kind: input, shape index: {}]
  %s5 = inlined_call_operand.hbm [shape: f32[8,128], index: 5, kind: output, shape index: {}]
  %s6 = sld [smem:[#allocation0]]
  $region30: #{gnn_forward.1} parent=0
    _
  %s8 = ssub.s32 1, %s6
  %s9 = scalar_select 0, %s8, %s6
  $region1: #{gnn_forward.1} parent=0
    #allocation2 [shape = 'u8[4096]{0}', space=vmem, size = 0x1000, scoped, tag = 'output window, operand 0, single buffered']
    #allocation3 [shape = 's32[1]{0}', space=sflag, size = 0x4, scoped, tag = 'scoped memory for gnn_forward.1']
    %10 = vsyncpa [#allocation3], 0
    // Predicated region
    $region2: #{gnn_forward.1} parent=1 // pred_check
      _
    $region3: #{gnn_forward.1} parent=1 // pred_check_branch
      %12 = sbr.rel (0) target = $region5
    $region4: #{gnn_forward.1} parent=1 // pred_region
      _
    $region5: #{gnn_forward.1} parent=1 // pred_fallthru
      _
    // Predicated region
    $region6: #{gnn_forward.1} parent=1 // pred_check
      _
    $region7: #{gnn_forward.1} parent=1 // pred_check_branch
      %14 = sbr.rel (0) target = $region9
    $region8: #{gnn_forward.1} parent=1 // pred_region
      _
    $region9: #{gnn_forward.1} parent=1 // pred_fallthru
      _
    // Predicated region
    $region10: #{gnn_forward.1} parent=1 // pred_check
      _
    $region11: #{gnn_forward.1} parent=1 // pred_check_branch
      %16 = sbr.rel (0) target = $region13
    $region12: #{gnn_forward.1} parent=1 // pred_region
      _
    $region13: #{gnn_forward.1} parent=1 // pred_fallthru
      _
    // Predicated region
    $region14: #{gnn_forward.1} parent=1 // pred_check
      _
    $region15: #{gnn_forward.1} parent=1 // pred_check_branch
      %18 = sbr.rel (0) target = $region17
    $region16: #{gnn_forward.1} parent=1 // pred_region
      _
    $region17: #{gnn_forward.1} parent=1 // pred_fallthru
      _
    // Predicated region
    $region18: #{gnn_forward.1} parent=1 // pred_check
      _
    $region19: #{gnn_forward.1} parent=1 // pred_check_branch
      %20 = sbr.rel (0) target = $region21
    $region20: #{gnn_forward.1} parent=1 // pred_region
      _
    $region21: #{gnn_forward.1} parent=1 // pred_fallthru
      _
    %v22 = vld [vmem:[%s0] sm:$0xf]
    %v23 = vld [vmem:[%s0 + $0x4] sm:$0xf]
    %v24 = vld [vmem:[%s0 + $0x8] sm:$0xf]
    %v25 = vld [vmem:[%s0 + $0xc] sm:$0xf]
    %v26 = vld [vmem:[%s0 + $0x10] sm:$0xf]
    %v27 = vld [vmem:[%s0 + $0x14] sm:$0xf]
    %v28 = vld [vmem:[%s0 + $0x18] sm:$0xf]
    %v29 = vld [vmem:[%s0 + $0x1c] sm:$0xf]
    %v30 = vld [vmem:[%s0 + $0x20] sm:$0xf]
    %v31 = vld [vmem:[%s0 + $0x24] sm:$0xf]
    %v32 = vld [vmem:[%s0 + $0x28] sm:$0xf]
    %v33 = vld [vmem:[%s0 + $0x2c] sm:$0xf]
    %v34 = vld [vmem:[%s0 + $0x30] sm:$0xf]
    %v35 = vld [vmem:[%s0 + $0x34] sm:$0xf]
    %v36 = vld [vmem:[%s0 + $0x38] sm:$0xf]
    %v37 = vld [vmem:[%s0 + $0x3c] sm:$0xf]
    %v38 = vld [vmem:[%s1] sm:$0xff]
    %v39 = vld [vmem:[%s1 + $0x8] sm:$0xff]
    %v40 = vld [vmem:[%s1 + $0x10] sm:$0xff]
    %v41 = vld [vmem:[%s1 + $0x18] sm:$0xff]
    %v42 = vld [vmem:[%s2] sm:$0xff]
    %v43 = vld [vmem:[%s2 + $0x8] sm:$0xff]
    %v44 = vld [vmem:[%s2 + $0x10] sm:$0xff]
    %v45 = vld [vmem:[%s2 + $0x18] sm:$0xff]
    %v46 = vld [vmem:[%s2 + $0x20] sm:$0xff]
    %v47 = vld [vmem:[%s2 + $0x28] sm:$0xff]
    %v48 = vld [vmem:[%s2 + $0x30] sm:$0xff]
    %v49 = vld [vmem:[%s2 + $0x38] sm:$0xff]
    %v50 = vld [vmem:[%s2 + $0x40] sm:$0xff]
    %v51 = vld [vmem:[%s3] sm:$0xff]
    %v52 = vld [vmem:[%s3 + $0x8] sm:$0xff]
    %v53 = vld [vmem:[%s3 + $0x10] sm:$0xff]
    %v54 = vld [vmem:[%s3 + $0x18] sm:$0xff]
    %v55 = vld [vmem:[%s4] sm:$0xff]
    %v56 = vld [vmem:[%s4 + $0x8] sm:$0xff]
    %v57 = vld [vmem:[%s4 + $0x10] sm:$0xff]
    %v58 = vld [vmem:[%s4 + $0x18] sm:$0xff]
    %v59 = vmul.f32 %v38, %v55
    %v60 = vmul.f32 %v39, %v56
    %v61 = vmul.f32 %v40, %v57
    %v62 = vmul.f32 %v41, %v58
    %v63 = vpack.c.bf16 %v60, %v59
    %v64 = vpack.c.bf16 %v62, %v61
    %v81 = vunpack.c.l.b16 %v22
    %v82 = vunpack.c.l.b16 %v23
    %v83 = vunpack.c.l.b16 %v24
    %v84 = vunpack.c.l.b16 %v25
    %v85 = vunpack.c.l.b16 %v26
    %v86 = vunpack.c.l.b16 %v27
    %v87 = vunpack.c.l.b16 %v28
    %v88 = vunpack.c.l.b16 %v29
    %v89 = vunpack.c.l.b16 %v30
    %v90 = vunpack.c.l.b16 %v31
    %v91 = vunpack.c.l.b16 %v32
    %v92 = vunpack.c.l.b16 %v33
    %v93 = vunpack.c.l.b16 %v34
    %v94 = vunpack.c.l.b16 %v35
    %v95 = vunpack.c.l.b16 %v36
    %v96 = vunpack.c.l.b16 %v37
    %v97 = vpack.c.b16 %v82, %v81
    %v98 = vpack.c.b16 %v84, %v83
    %v99 = vpack.c.b16 %v86, %v85
    %v100 = vpack.c.b16 %v88, %v87
    %v101 = vpack.c.b16 %v90, %v89
    %v102 = vpack.c.b16 %v92, %v91
    %v103 = vpack.c.b16 %v94, %v93
    %v104 = vpack.c.b16 %v96, %v95
    %113 = vmatprep.subr.bf16.mxu0 0
    %114 = vmatpush1.bf16.msra.mxu0 %v97
    %115 = vmatprep.subr.bf16.mxu0 0
    %116 = vmatpush1.bf16.msra.mxu0 %v98
    %117 = vmatprep.subr.bf16.mxu0 0
    %118 = vmatpush1.bf16.msra.mxu0 %v99
    %119 = vmatprep.subr.bf16.mxu0 0
    %120 = vmatpush1.bf16.msra.mxu0 %v100
    %121 = vmatprep.subr.bf16.mxu0 0
    %122 = vmatpush1.bf16.msra.mxu0 %v101
    %123 = vmatprep.subr.bf16.mxu0 0
    %124 = vmatpush1.bf16.msra.mxu0 %v102
    %125 = vmatprep.subr.bf16.mxu0 0
    %126 = vmatpush1.bf16.msra.mxu0 %v103
    %127 = vmatprep.subr.bf16.mxu0 0
    %128 = vmatpush1.bf16.msra.mxu0 %v104
    %129 = vmatprep.subr.bf16.mxu0 0
    %130 = vmatpush1.bf16.msra.mxu0 0
    %131 = vmatprep.subr.bf16.mxu0 0
    %132 = vmatpush1.bf16.msra.mxu0 0
    %133 = vmatprep.subr.bf16.mxu0 0
    %134 = vmatpush1.bf16.msra.mxu0 0
    %135 = vmatprep.subr.bf16.mxu0 0
    %136 = vmatpush1.bf16.msra.mxu0 0
    %137 = vmatprep.subr.bf16.mxu0 0
    %138 = vmatpush1.bf16.msra.mxu0 0
    %139 = vmatprep.subr.bf16.mxu0 0
    %140 = vmatpush1.bf16.msra.mxu0 0
    %141 = vmatprep.subr.bf16.mxu0 0
    %142 = vmatpush1.bf16.msra.mxu0 0
    %143 = vmatprep.subr.bf16.mxu0 0
    %144 = vmatpush1.bf16.msra.mxu0 0
    %145 = vmatprep.mubr.bf16.mxu0 0
    %146 = vmatmul.mubr.bf16.gmra.mrb[0].mxu0 %v63
    %v147 = vpop.f32.mrb[0].mxu0
    %v148 = vadd.f32 0.0, %v147
    %v149 = vpop.f32.mrb[0].mxu0
    %v150 = vpop.f32.mrb[0].mxu0
    %v151 = vadd.f32 0.0, %v150
    %v152 = vpop.f32.mrb[0].mxu0
    %153 = vmatprep.mubr.bf16.mxu0 0
    %154 = vmatmul.mubr.bf16.gmra.mrb[0].mxu0 %v64
    %v155 = vpop.f32.mrb[0].mxu0
    %v156 = vadd.f32 0.0, %v155
    %v157 = vpop.f32.mrb[0].mxu0
    %v158 = vpop.f32.mrb[0].mxu0
    %v159 = vadd.f32 0.0, %v158
    %v160 = vpop.f32.mrb[0].mxu0
    %161 = vdwg.mxu0
    %163 = vset.pattern.permute.xlu0 0
    %164 = vperm.xlu0 %163, %v51
    %v165 = vpop.permute.xlu0 %164
    %168 = vset.pattern.permute.xlu0 0
    %169 = vperm.xlu0 %168, %v52
    %v170 = vpop.permute.xlu0 %169
    %173 = vset.pattern.permute.xlu0 0
    %174 = vperm.xlu0 %173, %v53
    %v175 = vpop.permute.xlu0 %174
    %178 = vset.pattern.permute.xlu0 0
    %179 = vperm.xlu0 %178, %v54
    %v180 = vpop.permute.xlu0 %179
    %vm182 = vcmask 261120
    %v184 = vsel %vm182, %v42, 0
    %v187 = vsel %vm182, %v43, 0
    %v190 = vsel %vm182, %v44, 0
    %v193 = vsel %vm182, %v45, 0
    %195 = vmatprep.subr.mxu0 0.0
    %196 = vmatpush1.msra.mxu0 %v148
    %197 = vmatprep.subr.mxu0 0.0
    %198 = vmatpush1.msra.mxu0 %v151
    %199 = vmatprep.subr.mxu0 0.0
    %200 = vmatpush1.msra.mxu0 %v156
    %201 = vmatprep.subr.mxu0 0.0
    %202 = vmatpush1.msra.mxu0 %v159
    %203 = vmatprep.subr.mxu0 0.0
    %204 = vmatpush1.msra.mxu0 0.0
    %205 = vmatprep.subr.mxu0 0.0
    %206 = vmatpush1.msra.mxu0 0.0
    %207 = vmatprep.subr.mxu0 0.0
    %208 = vmatpush1.msra.mxu0 0.0
    %209 = vmatprep.subr.mxu0 0.0
    %210 = vmatpush1.msra.mxu0 0.0
    %211 = vmatprep.subr.mxu0 0.0
    %212 = vmatpush1.msra.mxu0 0.0
    %213 = vmatprep.subr.mxu0 0.0
    %214 = vmatpush1.msra.mxu0 0.0
    %215 = vmatprep.subr.mxu0 0.0
    %216 = vmatpush1.msra.mxu0 0.0
    %217 = vmatprep.subr.mxu0 0.0
    %218 = vmatpush1.msra.mxu0 0.0
    %219 = vmatprep.subr.mxu0 0.0
    %220 = vmatpush1.msra.mxu0 0.0
    %221 = vmatprep.subr.mxu0 0.0
    %222 = vmatpush1.msra.mxu0 0.0
    %223 = vmatprep.subr.mxu0 0.0
    %224 = vmatpush1.msra.mxu0 0.0
    %225 = vmatprep.subr.mxu0 0.0
    %226 = vmatpush1.msra.mxu0 0.0
    %227 = vmatprep.subr.mxu0 0.0
    %228 = vmatpush1.msra.mxu0 0.0
    %229 = vmatprep.subr.mxu0 0.0
    %230 = vmatpush1.msra.mxu0 0.0
    %231 = vmatprep.subr.mxu0 0.0
    %232 = vmatpush1.msra.mxu0 0.0
    %233 = vmatprep.subr.mxu0 0.0
    %234 = vmatpush1.msra.mxu0 0.0
    %235 = vmatprep.subr.mxu0 0.0
    %236 = vmatpush1.msra.mxu0 0.0
    %237 = vmatprep.subr.mxu0 0.0
    %238 = vmatpush1.msra.mxu0 0.0
    %239 = vmatprep.subr.mxu0 0.0
    %240 = vmatpush1.msra.mxu0 0.0
    %241 = vmatprep.subr.mxu0 0.0
    %242 = vmatpush1.msra.mxu0 0.0
    %243 = vmatprep.subr.mxu0 0.0
    %244 = vmatpush1.msra.mxu0 0.0
    %245 = vmatprep.subr.mxu0 0.0
    %246 = vmatpush1.msra.mxu0 0.0
    %247 = vmatprep.subr.mxu0 0.0
    %248 = vmatpush1.msra.mxu0 0.0
    %249 = vmatprep.subr.mxu0 0.0
    %250 = vmatpush1.msra.mxu0 0.0
    %251 = vmatprep.subr.mxu0 0.0
    %252 = vmatpush1.msra.mxu0 0.0
    %253 = vmatprep.subr.mxu0 0.0
    %254 = vmatpush1.msra.mxu0 0.0
    %255 = vmatprep.subr.mxu0 0.0
    %256 = vmatpush1.msra.mxu0 0.0
    %257 = vmatprep.subr.mxu0 0.0
    %258 = vmatpush1.msra.mxu0 0.0
    %259 = vmatprep.mubr.f32.mxu0 0.0
    %260 = vmatmul.mubr.f32.gmra.mrb[0].mxu0 %v184
    %v261 = vpop.f32.mrb[0].mxu0
    %v262 = vadd.f32 %v165, %v261
    %v263 = vpop.f32.mrb[0].mxu0
    %264 = vmatprep.mubr.f32.mxu0 0.0
    %265 = vmatmul.mubr.f32.gmra.mrb[0].mxu0 %v187
    %v266 = vpop.f32.mrb[0].mxu0
    %v267 = vadd.f32 %v170, %v266
    %v268 = vpop.f32.mrb[0].mxu0
    %269 = vmatprep.mubr.f32.mxu0 0.0
    %270 = vmatmul.mubr.f32.gmra.mrb[0].mxu0 %v190
    %v271 = vpop.f32.mrb[0].mxu0
    %v272 = vadd.f32 %v175, %v271
    %v273 = vpop.f32.mrb[0].mxu0
    %274 = vmatprep.mubr.f32.mxu0 0.0
    %275 = vmatmul.mubr.f32.gmra.mrb[0].mxu0 %v193
    %v276 = vpop.f32.mrb[0].mxu0
    %v277 = vadd.f32 %v180, %v276
    %v278 = vpop.f32.mrb[0].mxu0
    %279 = vdwg.mxu0
    %v280 = vadd.f32 %v262, %v267
    %v281 = vadd.f32 %v280, %v272
    %v282 = vadd.f32 %v281, %v277
    %v283 = vrot.slane %v282, 4
    %v284 = vadd.f32 %v282, %v283
    %v285 = vrot.slane %v284, 2
    %v286 = vadd.f32 %v284, %v285
    %v287 = vrot.slane %v286, 1
    %v288 = vadd.f32 %v286, %v287
    %v289 = vrcp.pop 32.0
    %v290 = vmul.f32 %v288, %v289
    %v291 = vsub.f32 %v262, %v290
    %v292 = vsub.f32 %v267, %v290
    %v293 = vsub.f32 %v272, %v290
    %v294 = vsub.f32 %v277, %v290
    %v295 = vmul.f32 %v291, %v291
    %v296 = vmul.f32 %v292, %v292
    %v297 = vmul.f32 %v293, %v293
    %v298 = vmul.f32 %v294, %v294
    %v299 = vadd.f32 %v295, %v296
    %v300 = vadd.f32 %v299, %v297
    %v301 = vadd.f32 %v300, %v298
    %v302 = vrot.slane %v301, 4
    %v303 = vadd.f32 %v301, %v302
    %v304 = vrot.slane %v303, 2
    %v305 = vadd.f32 %v303, %v304
    %v306 = vrot.slane %v305, 1
    %v307 = vadd.f32 %v305, %v306
    %v308 = vmul.f32 %v307, %v289
    %v309 = vadd.f32 %v308, 1e-05
    %v310 = vrsqrt.pop %v309
    %v311 = vmul.f32 %v291, %v310
    %v312 = vmul.f32 %v292, %v310
    %v313 = vmul.f32 %v293, %v310
    %v314 = vmul.f32 %v294, %v310
    %315 = vset.pattern.permute.xlu0 1
    %316 = vperm.xlu0 %315, %v51
    %v317 = vpop.permute.xlu0 %316
    %319 = vset.pattern.permute.xlu0 1
    %320 = vperm.xlu0 %319, %v52
    %v321 = vpop.permute.xlu0 %320
    %323 = vset.pattern.permute.xlu0 1
    %324 = vperm.xlu0 %323, %v53
    %v325 = vpop.permute.xlu0 %324
    %327 = vset.pattern.permute.xlu0 1
    %328 = vperm.xlu0 %327, %v54
    %v329 = vpop.permute.xlu0 %328
    %v331 = vmul.f32 %v311, %v317
    %v332 = vmul.f32 %v312, %v321
    %v333 = vmul.f32 %v313, %v325
    %v334 = vmul.f32 %v314, %v329
    %335 = vset.pattern.permute.xlu0 2
    %336 = vperm.xlu0 %335, %v51
    %v337 = vpop.permute.xlu0 %336
    %339 = vset.pattern.permute.xlu0 2
    %340 = vperm.xlu0 %339, %v52
    %v341 = vpop.permute.xlu0 %340
    %343 = vset.pattern.permute.xlu0 2
    %344 = vperm.xlu0 %343, %v53
    %v345 = vpop.permute.xlu0 %344
    %347 = vset.pattern.permute.xlu0 2
    %348 = vperm.xlu0 %347, %v54
    %v349 = vpop.permute.xlu0 %348
    %v351 = vadd.f32 %v331, %v337
    %v352 = vadd.f32 %v332, %v341
    %v353 = vadd.f32 %v333, %v345
    %v354 = vadd.f32 %v334, %v349
    %v355 = vmax.f32 %v351, 0.0
    %v356 = vmax.f32 %v352, 0.0
    %v357 = vmax.f32 %v353, 0.0
    %v358 = vmax.f32 %v354, 0.0
    %v359 = vld [vmem:[%s4 + $0x20] sm:$0xff]
    %v360 = vld [vmem:[%s4 + $0x28] sm:$0xff]
    %v361 = vld [vmem:[%s4 + $0x30] sm:$0xff]
    %v362 = vld [vmem:[%s4 + $0x38] sm:$0xff]
    %v363 = vmul.f32 %v355, %v359
    %v364 = vmul.f32 %v356, %v360
    %v365 = vmul.f32 %v357, %v361
    %v366 = vmul.f32 %v358, %v362
    %v367 = vpack.c.bf16 %v364, %v363
    %v368 = vpack.c.bf16 %v366, %v365
    %369 = vmatprep.subr.bf16.mxu0 0
    %370 = vmatpush1.bf16.msra.mxu0 %v97
    %371 = vmatprep.subr.bf16.mxu0 0
    %372 = vmatpush1.bf16.msra.mxu0 %v98
    %373 = vmatprep.subr.bf16.mxu0 0
    %374 = vmatpush1.bf16.msra.mxu0 %v99
    %375 = vmatprep.subr.bf16.mxu0 0
    %376 = vmatpush1.bf16.msra.mxu0 %v100
    %377 = vmatprep.subr.bf16.mxu0 0
    %378 = vmatpush1.bf16.msra.mxu0 %v101
    %379 = vmatprep.subr.bf16.mxu0 0
    %380 = vmatpush1.bf16.msra.mxu0 %v102
    %381 = vmatprep.subr.bf16.mxu0 0
    %382 = vmatpush1.bf16.msra.mxu0 %v103
    %383 = vmatprep.subr.bf16.mxu0 0
    %384 = vmatpush1.bf16.msra.mxu0 %v104
    %385 = vmatprep.subr.bf16.mxu0 0
    %386 = vmatpush1.bf16.msra.mxu0 0
    %387 = vmatprep.subr.bf16.mxu0 0
    %388 = vmatpush1.bf16.msra.mxu0 0
    %389 = vmatprep.subr.bf16.mxu0 0
    %390 = vmatpush1.bf16.msra.mxu0 0
    %391 = vmatprep.subr.bf16.mxu0 0
    %392 = vmatpush1.bf16.msra.mxu0 0
    %393 = vmatprep.subr.bf16.mxu0 0
    %394 = vmatpush1.bf16.msra.mxu0 0
    %395 = vmatprep.subr.bf16.mxu0 0
    %396 = vmatpush1.bf16.msra.mxu0 0
    %397 = vmatprep.subr.bf16.mxu0 0
    %398 = vmatpush1.bf16.msra.mxu0 0
    %399 = vmatprep.subr.bf16.mxu0 0
    %400 = vmatpush1.bf16.msra.mxu0 0
    %401 = vmatprep.mubr.bf16.mxu0 0
    %402 = vmatmul.mubr.bf16.gmra.mrb[0].mxu0 %v367
    %v403 = vpop.f32.mrb[0].mxu0
    %v404 = vadd.f32 0.0, %v403
    %v405 = vpop.f32.mrb[0].mxu0
    %v406 = vpop.f32.mrb[0].mxu0
    %v407 = vadd.f32 0.0, %v406
    %v408 = vpop.f32.mrb[0].mxu0
    %409 = vmatprep.mubr.bf16.mxu0 0
    %410 = vmatmul.mubr.bf16.gmra.mrb[0].mxu0 %v368
    %v411 = vpop.f32.mrb[0].mxu0
    %v412 = vadd.f32 0.0, %v411
    %v413 = vpop.f32.mrb[0].mxu0
    %v414 = vpop.f32.mrb[0].mxu0
    %v415 = vadd.f32 0.0, %v414
    %v416 = vpop.f32.mrb[0].mxu0
    %417 = vdwg.mxu0
    %418 = vset.pattern.permute.xlu0 3
    %419 = vperm.xlu0 %418, %v51
    %v420 = vpop.permute.xlu0 %419
    %422 = vset.pattern.permute.xlu0 3
    %423 = vperm.xlu0 %422, %v52
    %v424 = vpop.permute.xlu0 %423
    %426 = vset.pattern.permute.xlu0 3
    %427 = vperm.xlu0 %426, %v53
    %v428 = vpop.permute.xlu0 %427
    %430 = vset.pattern.permute.xlu0 3
    %431 = vperm.xlu0 %430, %v54
    %v432 = vpop.permute.xlu0 %431
    %v435 = vsel %vm182, %v46, 0
    %v438 = vsel %vm182, %v47, 0
    %v441 = vsel %vm182, %v48, 0
    %v444 = vsel %vm182, %v49, 0
    %446 = vmatprep.subr.mxu0 0.0
    %447 = vmatpush1.msra.mxu0 %v404
    %448 = vmatprep.subr.mxu0 0.0
    %449 = vmatpush1.msra.mxu0 %v407
    %450 = vmatprep.subr.mxu0 0.0
    %451 = vmatpush1.msra.mxu0 %v412
    %452 = vmatprep.subr.mxu0 0.0
    %453 = vmatpush1.msra.mxu0 %v415
    %454 = vmatprep.subr.mxu0 0.0
    %455 = vmatpush1.msra.mxu0 0.0
    %456 = vmatprep.subr.mxu0 0.0
    %457 = vmatpush1.msra.mxu0 0.0
    %458 = vmatprep.subr.mxu0 0.0
    %459 = vmatpush1.msra.mxu0 0.0
    %460 = vmatprep.subr.mxu0 0.0
    %461 = vmatpush1.msra.mxu0 0.0
    %462 = vmatprep.subr.mxu0 0.0
    %463 = vmatpush1.msra.mxu0 0.0
    %464 = vmatprep.subr.mxu0 0.0
    %465 = vmatpush1.msra.mxu0 0.0
    %466 = vmatprep.subr.mxu0 0.0
    %467 = vmatpush1.msra.mxu0 0.0
    %468 = vmatprep.subr.mxu0 0.0
    %469 = vmatpush1.msra.mxu0 0.0
    %470 = vmatprep.subr.mxu0 0.0
    %471 = vmatpush1.msra.mxu0 0.0
    %472 = vmatprep.subr.mxu0 0.0
    %473 = vmatpush1.msra.mxu0 0.0
    %474 = vmatprep.subr.mxu0 0.0
    %475 = vmatpush1.msra.mxu0 0.0
    %476 = vmatprep.subr.mxu0 0.0
    %477 = vmatpush1.msra.mxu0 0.0
    %478 = vmatprep.subr.mxu0 0.0
    %479 = vmatpush1.msra.mxu0 0.0
    %480 = vmatprep.subr.mxu0 0.0
    %481 = vmatpush1.msra.mxu0 0.0
    %482 = vmatprep.subr.mxu0 0.0
    %483 = vmatpush1.msra.mxu0 0.0
    %484 = vmatprep.subr.mxu0 0.0
    %485 = vmatpush1.msra.mxu0 0.0
    %486 = vmatprep.subr.mxu0 0.0
    %487 = vmatpush1.msra.mxu0 0.0
    %488 = vmatprep.subr.mxu0 0.0
    %489 = vmatpush1.msra.mxu0 0.0
    %490 = vmatprep.subr.mxu0 0.0
    %491 = vmatpush1.msra.mxu0 0.0
    %492 = vmatprep.subr.mxu0 0.0
    %493 = vmatpush1.msra.mxu0 0.0
    %494 = vmatprep.subr.mxu0 0.0
    %495 = vmatpush1.msra.mxu0 0.0
    %496 = vmatprep.subr.mxu0 0.0
    %497 = vmatpush1.msra.mxu0 0.0
    %498 = vmatprep.subr.mxu0 0.0
    %499 = vmatpush1.msra.mxu0 0.0
    %500 = vmatprep.subr.mxu0 0.0
    %501 = vmatpush1.msra.mxu0 0.0
    %502 = vmatprep.subr.mxu0 0.0
    %503 = vmatpush1.msra.mxu0 0.0
    %504 = vmatprep.subr.mxu0 0.0
    %505 = vmatpush1.msra.mxu0 0.0
    %506 = vmatprep.subr.mxu0 0.0
    %507 = vmatpush1.msra.mxu0 0.0
    %508 = vmatprep.subr.mxu0 0.0
    %509 = vmatpush1.msra.mxu0 0.0
    %510 = vmatprep.mubr.f32.mxu0 0.0
    %511 = vmatmul.mubr.f32.gmra.mrb[0].mxu0 %v435
    %v512 = vpop.f32.mrb[0].mxu0
    %v513 = vadd.f32 %v420, %v512
    %v514 = vpop.f32.mrb[0].mxu0
    %515 = vmatprep.mubr.f32.mxu0 0.0
    %516 = vmatmul.mubr.f32.gmra.mrb[0].mxu0 %v438
    %v517 = vpop.f32.mrb[0].mxu0
    %v518 = vadd.f32 %v424, %v517
    %v519 = vpop.f32.mrb[0].mxu0
    %520 = vmatprep.mubr.f32.mxu0 0.0
    %521 = vmatmul.mubr.f32.gmra.mrb[0].mxu0 %v441
    %v522 = vpop.f32.mrb[0].mxu0
    %v523 = vadd.f32 %v428, %v522
    %v524 = vpop.f32.mrb[0].mxu0
    %525 = vmatprep.mubr.f32.mxu0 0.0
    %526 = vmatmul.mubr.f32.gmra.mrb[0].mxu0 %v444
    %v527 = vpop.f32.mrb[0].mxu0
    %v528 = vadd.f32 %v432, %v527
    %v529 = vpop.f32.mrb[0].mxu0
    %530 = vdwg.mxu0
    %v531 = vadd.f32 %v513, %v518
    %v532 = vadd.f32 %v531, %v523
    %v533 = vadd.f32 %v532, %v528
    %v534 = vrot.slane %v533, 4
    %v535 = vadd.f32 %v533, %v534
    %v536 = vrot.slane %v535, 2
    %v537 = vadd.f32 %v535, %v536
    %v538 = vrot.slane %v537, 1
    %v539 = vadd.f32 %v537, %v538
    %v540 = vmul.f32 %v539, %v289
    %v541 = vsub.f32 %v513, %v540
    %v542 = vsub.f32 %v518, %v540
    %v543 = vsub.f32 %v523, %v540
    %v544 = vsub.f32 %v528, %v540
    %v545 = vmul.f32 %v541, %v541
    %v546 = vmul.f32 %v542, %v542
    %v547 = vmul.f32 %v543, %v543
    %v548 = vmul.f32 %v544, %v544
    %v549 = vadd.f32 %v545, %v546
    %v550 = vadd.f32 %v549, %v547
    %v551 = vadd.f32 %v550, %v548
    %v552 = vrot.slane %v551, 4
    %v553 = vadd.f32 %v551, %v552
    %v554 = vrot.slane %v553, 2
    %v555 = vadd.f32 %v553, %v554
    %v556 = vrot.slane %v555, 1
    %v557 = vadd.f32 %v555, %v556
    %v558 = vmul.f32 %v557, %v289
    %v559 = vadd.f32 %v558, 1e-05
    %v560 = vrsqrt.pop %v559
    %v561 = vmul.f32 %v541, %v560
    %v562 = vmul.f32 %v542, %v560
    %v563 = vmul.f32 %v543, %v560
    %v564 = vmul.f32 %v544, %v560
    %565 = vset.pattern.permute.xlu0 4
    %566 = vperm.xlu0 %565, %v51
    %v567 = vpop.permute.xlu0 %566
    %569 = vset.pattern.permute.xlu0 4
    %570 = vperm.xlu0 %569, %v52
    %v571 = vpop.permute.xlu0 %570
    %573 = vset.pattern.permute.xlu0 4
    %574 = vperm.xlu0 %573, %v53
    %v575 = vpop.permute.xlu0 %574
    %577 = vset.pattern.permute.xlu0 4
    %578 = vperm.xlu0 %577, %v54
    %v579 = vpop.permute.xlu0 %578
    %v581 = vmul.f32 %v561, %v567
    %v582 = vmul.f32 %v562, %v571
    %v583 = vmul.f32 %v563, %v575
    %v584 = vmul.f32 %v564, %v579
    %585 = vset.pattern.permute.xlu0 5
    %586 = vperm.xlu0 %585, %v51
    %v587 = vpop.permute.xlu0 %586
    %589 = vset.pattern.permute.xlu0 5
    %590 = vperm.xlu0 %589, %v52
    %v591 = vpop.permute.xlu0 %590
    %593 = vset.pattern.permute.xlu0 5
    %594 = vperm.xlu0 %593, %v53
    %v595 = vpop.permute.xlu0 %594
    %597 = vset.pattern.permute.xlu0 5
    %598 = vperm.xlu0 %597, %v54
    %v599 = vpop.permute.xlu0 %598
    %v601 = vadd.f32 %v581, %v587
    %v602 = vadd.f32 %v582, %v591
    %v603 = vadd.f32 %v583, %v595
    %v604 = vadd.f32 %v584, %v599
    %v605 = vmax.f32 %v601, 0.0
    %v606 = vmax.f32 %v602, 0.0
    %v607 = vmax.f32 %v603, 0.0
    %v608 = vmax.f32 %v604, 0.0
    %v609 = vld [vmem:[%s4 + $0x40] sm:$0xff]
    %v610 = vld [vmem:[%s4 + $0x48] sm:$0xff]
    %v611 = vld [vmem:[%s4 + $0x50] sm:$0xff]
    %v612 = vld [vmem:[%s4 + $0x58] sm:$0xff]
    %v613 = vmul.f32 %v605, %v609
    %v614 = vmul.f32 %v606, %v610
    %v615 = vmul.f32 %v607, %v611
    %v616 = vmul.f32 %v608, %v612
    %617 = vset.pattern.permute.xlu0 6
    %618 = vperm.xlu0 %617, %v51
    %v619 = vpop.permute.xlu0 %618
    %v622 = vsel %vm182, %v50, 0
    %624 = vmatprep.subr.mxu0 0.0
    %625 = vmatpush1.msra.mxu0 %v613
    %626 = vmatprep.subr.mxu0 0.0
    %627 = vmatpush1.msra.mxu0 %v614
    %628 = vmatprep.subr.mxu0 0.0
    %629 = vmatpush1.msra.mxu0 %v615
    %630 = vmatprep.subr.mxu0 0.0
    %631 = vmatpush1.msra.mxu0 %v616
    %632 = vmatprep.subr.mxu0 0.0
    %633 = vmatpush1.msra.mxu0 0.0
    %634 = vmatprep.subr.mxu0 0.0
    %635 = vmatpush1.msra.mxu0 0.0
    %636 = vmatprep.subr.mxu0 0.0
    %637 = vmatpush1.msra.mxu0 0.0
    %638 = vmatprep.subr.mxu0 0.0
    %639 = vmatpush1.msra.mxu0 0.0
    %640 = vmatprep.subr.mxu0 0.0
    %641 = vmatpush1.msra.mxu0 0.0
    %642 = vmatprep.subr.mxu0 0.0
    %643 = vmatpush1.msra.mxu0 0.0
    %644 = vmatprep.subr.mxu0 0.0
    %645 = vmatpush1.msra.mxu0 0.0
    %646 = vmatprep.subr.mxu0 0.0
    %647 = vmatpush1.msra.mxu0 0.0
    %648 = vmatprep.subr.mxu0 0.0
    %649 = vmatpush1.msra.mxu0 0.0
    %650 = vmatprep.subr.mxu0 0.0
    %651 = vmatpush1.msra.mxu0 0.0
    %652 = vmatprep.subr.mxu0 0.0
    %653 = vmatpush1.msra.mxu0 0.0
    %654 = vmatprep.subr.mxu0 0.0
    %655 = vmatpush1.msra.mxu0 0.0
    %656 = vmatprep.subr.mxu0 0.0
    %657 = vmatpush1.msra.mxu0 0.0
    %658 = vmatprep.subr.mxu0 0.0
    %659 = vmatpush1.msra.mxu0 0.0
    %660 = vmatprep.subr.mxu0 0.0
    %661 = vmatpush1.msra.mxu0 0.0
    %662 = vmatprep.subr.mxu0 0.0
    %663 = vmatpush1.msra.mxu0 0.0
    %664 = vmatprep.subr.mxu0 0.0
    %665 = vmatpush1.msra.mxu0 0.0
    %666 = vmatprep.subr.mxu0 0.0
    %667 = vmatpush1.msra.mxu0 0.0
    %668 = vmatprep.subr.mxu0 0.0
    %669 = vmatpush1.msra.mxu0 0.0
    %670 = vmatprep.subr.mxu0 0.0
    %671 = vmatpush1.msra.mxu0 0.0
    %672 = vmatprep.subr.mxu0 0.0
    %673 = vmatpush1.msra.mxu0 0.0
    %674 = vmatprep.subr.mxu0 0.0
    %675 = vmatpush1.msra.mxu0 0.0
    %676 = vmatprep.subr.mxu0 0.0
    %677 = vmatpush1.msra.mxu0 0.0
    %678 = vmatprep.subr.mxu0 0.0
    %679 = vmatpush1.msra.mxu0 0.0
    %680 = vmatprep.subr.mxu0 0.0
    %681 = vmatpush1.msra.mxu0 0.0
    %682 = vmatprep.subr.mxu0 0.0
    %683 = vmatpush1.msra.mxu0 0.0
    %684 = vmatprep.subr.mxu0 0.0
    %685 = vmatpush1.msra.mxu0 0.0
    %686 = vmatprep.subr.mxu0 0.0
    %687 = vmatpush1.msra.mxu0 0.0
    %688 = vmatprep.mubr.f32.mxu0 0.0
    %689 = vmatmul.mubr.f32.gmra.mrb[0].mxu0 %v622
    %v690 = vpop.f32.mrb[0].mxu0
    %v691 = vadd.f32 %v619, %v690
    %v692 = vpop.f32.mrb[0].mxu0
    %693 = vdwg.mxu0
    %694 = vst [vmem:[#allocation2] sm:$0xff] %v691
    // Predicated region
    $region22: #{gnn_forward.1} parent=1 // pred_check
      _
    $region23: #{gnn_forward.1} parent=1 // pred_check_branch
      %696 = sbr.rel (0) target = $region25
    $region24: #{gnn_forward.1} parent=1 // pred_region
      %s698 = ssub.s32 128, 128
      %699 = vsyncadd [#allocation3], %s698
      %s701 = sshll.u32 [#allocation2], 4
      %s702 = int_to_ptr.vmem [resolvable:$true] %s701
      %704 = dma.vmem_to_hbm [thread:$0]  %s702, 128, %s5, [#allocation3]
    $region25: #{gnn_forward.1} parent=1 // pred_fallthru
      _
    // Predicated region
    $region26: #{gnn_forward.1} parent=1 // pred_check
      _
    $region27: #{gnn_forward.1} parent=1 // pred_check_branch
      %706 = sbr.rel (0) target = $region29
    $region28: #{gnn_forward.1} parent=1 // pred_region
      %707 = dma.done [#allocation3], 128
    $region29: #{gnn_forward.1} parent=1 // pred_fallthru
      _
    %708 = vsyncpa [#allocation3], 1

</llo_original>
